<compile_context>
chip_gen: v5e
topology: v5e:2x2
jax: 0.10.0
libtpu: 0.0.40
codegen_flags: <defaults>
</compile_context>

<pallas_src>
import functools
import math

import jax
import jax.numpy as jnp
from jax import lax
from jax.experimental import pallas as pl
from jax.experimental.pallas import tpu as pltpu

CHN_MID = 32          # Dist2LogitLayer(chn_mid=32)
EPS = 0.1             # Dist2LogitLayer.forward eps
LOG_CLAMP = -100.0    # torch BCELoss clamps log terms at -100
NEG_SLOPE = 0.2       # LeakyReLU(0.2)


# --------------------------------------------------------------------------
# Fused kernel: 5-feature build, 3-layer per-pixel MLP, BCE-from-logit,
# masked per-lane partial sums accumulated in VMEM scratch, written to a
# per-core output row on the last reduction step.
# --------------------------------------------------------------------------
def _bce_ranking_kernel(d0_ref, d1_ref, j_ref,
                        w1_ref, b1_ref, w2_ref, b2_ref, w3_ref, b3_ref,
                        out_ref, acc_ref, *,
                        n_valid, tile, chunk, tiles_per_core):
    c = pl.program_id(0)          # megacore partition (parallel)
    i = pl.program_id(1)          # pixel tile within this core (arbitrary / reduction)

    @pl.when(i == 0)
    def _init():
        acc_ref[...] = jnp.zeros_like(acc_ref)

    # Global pixel offset of this (possibly duplicated & clamped) tile.  The wrapper
    # clamps the *block index* in the index_map; here we use the unclamped offset so
    # duplicated / out-of-range tiles are fully masked out below.
    base = (c * tiles_per_core + i) * tile

    # Weights (resident across the whole grid — constant index_map).
    w1 = w1_ref[...]                              # (32, 5)
    w1a, w1b, w1c, w1d, w1e = (w1[:, 0:1], w1[:, 1:2], w1[:, 2:3],
                               w1[:, 3:4], w1[:, 4:5])
    b1 = b1_ref[...]                              # (32, 1)
    w2 = w2_ref[...].astype(jnp.bfloat16)         # (32, 32) — bf16 MXU operand
    b2 = b2_ref[...]                              # (32, 1)
    w3 = w3_ref[...]                              # (32, 1)  (transposed in wrapper)
    b3 = b3_ref[...]                              # (1, 1)

    lane = lax.broadcasted_iota(jnp.int32, (1, chunk), 1)
    nchunks = tile // chunk

    def body(k, carry):
        off = pl.multiple_of(k * chunk, chunk)
        d0 = d0_ref[:, pl.ds(off, chunk)]         # (1, chunk) pixels on lanes
        d1 = d1_ref[:, pl.ds(off, chunk)]
        jd = j_ref[:, pl.ds(off, chunk)]

        # ---- layer 1: "cat + 1x1 conv(5->32)" as 5 VPU broadcast FMAs
        h = (w1a * d0 + w1b * d1 + w1c * (d0 - d1)
             + w1d * (d0 / (d1 + EPS)) + w1e * (d1 / (d0 + EPS)) + b1)   # (32, chunk)
        h = jnp.where(h > 0, h, NEG_SLOPE * h)                           # LeakyReLU(0.2)

        # ---- layer 2: 1x1 conv(32->32) on the MXU, bf16 operands, f32 accumulation
        h = jnp.dot(w2, h.astype(jnp.bfloat16),
                    preferred_element_type=jnp.float32) + b2
        h = jnp.where(h > 0, h, NEG_SLOPE * h)

        # ---- layer 3: 32->1 projection off the MXU (VPU multiply + sublane reduce)
        z = jnp.sum(w3 * h, axis=0, keepdims=True) + b3                  # (1, chunk)

        # ---- BCE directly from the logit:
        #   -log p      = softplus(-z) = softplus(z) - z
        #   -log (1-p)  = softplus(z)
        # each clamped at 100, which reproduces torch BCELoss's -100 log clamp.
        per = (jd + 1.0) * 0.5
        sp = jnp.maximum(z, 0.0) + jnp.log(1.0 + jnp.exp(-jnp.abs(z)))   # softplus(z)
        bce = (per * jnp.minimum(sp - z, -LOG_CLAMP)
               + (1.0 - per) * jnp.minimum(sp, -LOG_CLAMP))              # (1, chunk)

        # mask padded / duplicated / garbage-tail pixels; accumulate per-lane sums
        mask = (base + off + lane) < n_valid
        acc_ref[...] += jnp.where(mask, bce, 0.0)
        return carry

    lax.fori_loop(0, nchunks, body, 0, unroll=min(8, nchunks))

    @pl.when(i == pl.num_programs(1) - 1)
    def _finalize():
        out_ref[...] = acc_ref[...].reshape(out_ref.shape)


def bce_ranking_loss(params, d0, d1, judge, *, tile=16384, chunk=512):
    # d0, d1, judge: (B, 1, H, W) float — same shape (BCELoss requires exact match).
    assert d0.shape == d1.shape == judge.shape
    n = math.prod(d0.shape)

    d0f = d0.reshape(1, n).astype(jnp.float32)
    d1f = d1.reshape(1, n).astype(jnp.float32)
    jf = judge.reshape(1, n).astype(jnp.float32)

    # lane-dense chunk (multiple of 128); tile = pixels per grid step (multiple of chunk)
    chunk = max(128, min(chunk, pl.cdiv(n, 128) * 128))
    assert chunk % 128 == 0
    tile = min(tile, pl.cdiv(n, chunk) * chunk)
    tile = max(chunk, (tile // chunk) * chunk)
    assert tile % chunk == 0

    n_tiles = pl.cdiv(n, tile)            # real tiles (last one may be ragged — no pad)
    tiles_per_core = pl.cdiv(n_tiles, 2)  # 2-way pixel split for v7x megacore
    last_tile = n_tiles - 1

    def px_map(c, i):
        # clamp to the last real tile; duplicated steps are neutralized by the lane mask
        return (0, jnp.minimum(c * tiles_per_core + i, last_tile))

    def const_map(c, i):
        return (0, 0)

    kernel = functools.partial(_bce_ranking_kernel, n_valid=n, tile=tile,
                               chunk=chunk, tiles_per_core=tiles_per_core)

    w3t = params["w3"].reshape(CHN_MID, 1)   # (1,32) conv weight -> (32,1) column

    out = pl.pallas_call(
        kernel,
        out_shape=jax.ShapeDtypeStruct((2, 1, chunk), jnp.float32),  # per-core partials
        grid=(2, tiles_per_core),
        in_specs=[
            pl.BlockSpec((1, tile), px_map),                  # d0
            pl.BlockSpec((1, tile), px_map),                  # d1
            pl.BlockSpec((1, tile), px_map),                  # judge
            pl.BlockSpec((CHN_MID, 5), const_map),            # w1
            pl.BlockSpec((CHN_MID, 1), const_map),            # b1
            pl.BlockSpec((CHN_MID, CHN_MID), const_map),      # w2
            pl.BlockSpec((CHN_MID, 1), const_map),            # b2
            pl.BlockSpec((CHN_MID, 1), const_map),            # w3 (transposed)
            pl.BlockSpec((1, 1), const_map),                  # b3
        ],
        out_specs=pl.BlockSpec((1, 1, chunk), lambda c, i: (c, 0, 0)),
        scratch_shapes=[pltpu.VMEM((1, chunk), jnp.float32)],
        compiler_params=pltpu.CompilerParams(
            dimension_semantics=("parallel", "arbitrary")),
    )(d0f, d1f, jf,
      params["w1"], params["b1"], params["w2"], params["b2"], w3t, params["b3"])

    # tiny final cross-lane reduce + mean normalization in the wrapper
    return jnp.sum(out) / jnp.float32(n)


# --------------------------------------------------------------------------
# Params: deterministic stand-in matching torch Conv2d default init distribution
# (kaiming-uniform: U(-1/sqrt(fan_in), 1/sqrt(fan_in)) for weight and bias).
# --------------------------------------------------------------------------
def init_params(key):
    def conv_init(k, cout, cin):
        kw, kb = jax.random.split(k)
        bound = 1.0 / math.sqrt(cin)
        w = jax.random.uniform(kw, (cout, cin), jnp.float32, -bound, bound)
        b = jax.random.uniform(kb, (cout, 1), jnp.float32, -bound, bound)
        return w, b

    k1, k2, k3 = jax.random.split(key, 3)
    w1, b1 = conv_init(k1, CHN_MID, 5)
    w2, b2 = conv_init(k2, CHN_MID, CHN_MID)
    w3, b3 = conv_init(k3, 1, CHN_MID)
    return {"w1": w1, "b1": b1, "w2": w2, "b2": b2, "w3": w3, "b3": b3}


# Pure-JAX reference (torch-exact math). With bf16_matmul=True it mimics the
# kernel's bf16 MXU operands on layer 2 (f32 accumulation kept).
def bce_ranking_loss_reference(params, d0, d1, judge, *, bf16_matmul=False):
    d0f = d0.reshape(1, -1).astype(jnp.float32)
    d1f = d1.reshape(1, -1).astype(jnp.float32)
    jf = judge.reshape(1, -1).astype(jnp.float32)
    feat = jnp.concatenate(
        [d0f, d1f, d0f - d1f, d0f / (d1f + EPS), d1f / (d0f + EPS)], axis=0)
    h = params["w1"] @ feat + params["b1"]
    h = jnp.where(h > 0, h, NEG_SLOPE * h)
    if bf16_matmul:
        h = jnp.dot(params["w2"].astype(jnp.bfloat16), h.astype(jnp.bfloat16),
                    preferred_element_type=jnp.float32) + params["b2"]
    else:
        h = params["w2"] @ h + params["b2"]
    h = jnp.where(h > 0, h, NEG_SLOPE * h)
    z = params["w3"] @ h + params["b3"]
    p = 1.0 / (1.0 + jnp.exp(-z))
    per = (jf + 1.0) * 0.5
    bce = -(per * jnp.maximum(jnp.log(p), LOG_CLAMP)
            + (1.0 - per) * jnp.maximum(jnp.log(1.0 - p), LOG_CLAMP))
    return jnp.mean(bce)


if __name__ == "__main__":
    key = jax.random.PRNGKey(0)
    kp, k0, k1, kj = jax.random.split(key, 4)
    params = init_params(kp)

    # Dist2LogitLayer requires C=1 (cat -> 5 channels); W=15 makes n=480 so the
    # ragged last block / n_valid mask path is exercised (no wrapper-side padding).
    B, C, H, W = 2, 1, 16, 15
    d0 = jax.random.uniform(k0, (B, C, H, W), jnp.float32)            # distances >= 0
    d1 = jax.random.uniform(k1, (B, C, H, W), jnp.float32)
    judge = jax.random.uniform(kj, (B, C, H, W), jnp.float32) * 2.0 - 1.0   # in [-1, 1]

    # Small explicit tiling: 2 real pixel tiles -> both megacore partitions get work,
    # multi-chunk inner loop, ragged masked tail.
    loss_small_fn = jax.jit(functools.partial(bce_ranking_loss, tile=256, chunk=128))
    loss_a = jax.block_until_ready(loss_small_fn(params, d0, d1, judge))

    # Default (large-tile) configuration — collapses to a single tile at this size.
    loss_default_fn = jax.jit(bce_ranking_loss)
    loss_b = jax.block_until_ready(loss_default_fn(params, d0, d1, judge))

    ref_bf16 = bce_ranking_loss_reference(params, d0, d1, judge, bf16_matmul=True)
    ref_f32 = bce_ranking_loss_reference(params, d0, d1, judge, bf16_matmul=False)

    for loss in (loss_a, loss_b):
        assert loss.shape == ()
        assert bool(jnp.isfinite(loss))
        # tight check vs reference that mimics the bf16 MXU operands
        assert bool(jnp.allclose(loss, ref_bf16, rtol=2e-4, atol=2e-5)), (loss, ref_bf16)
        # looser check vs torch-exact f32 math (bf16 operand rounding on layer 2)
        assert bool(jnp.allclose(loss, ref_f32, rtol=5e-3, atol=5e-4)), (loss, ref_f32)
    print("KERNEL_OK")
</pallas_src>

<mosaic_0001>
module attributes {stable_mosaic.version = 11 : i64} {
  func.func @_bce_ranking_kernel(%arg0: i32, %arg1: i32, %arg2: memref<1x256xf32, #tpu.memory_space<vmem>>, %arg3: memref<1x256xf32, #tpu.memory_space<vmem>>, %arg4: memref<1x256xf32, #tpu.memory_space<vmem>>, %arg5: memref<32x5xf32, #tpu.memory_space<vmem>>, %arg6: memref<32x1xf32, #tpu.memory_space<vmem>>, %arg7: memref<32x32xf32, #tpu.memory_space<vmem>>, %arg8: memref<32x1xf32, #tpu.memory_space<vmem>>, %arg9: memref<32x1xf32, #tpu.memory_space<vmem>>, %arg10: memref<1x1xf32, #tpu.memory_space<vmem>>, %arg11: memref<1x1x128xf32, #tpu.memory_space<vmem>>, %arg12: memref<1x128xf32, #tpu.memory_space<vmem>>) attributes {dimension_semantics = [#tpu.dimension_semantics<parallel>, #tpu.dimension_semantics<arbitrary>], iteration_bounds = array<i64: 2, 1>, scalar_prefetch = 0 : i64, scratch_operands = 1 : i64, tpu.core_type = #tpu.core_type<tc>, window_params = [{transform_indices = @transform_0, window_bounds = array<i64: 1, 256>}, {transform_indices = @transform_1, window_bounds = array<i64: 1, 256>}, {transform_indices = @transform_2, window_bounds = array<i64: 1, 256>}, {pipeline_mode = #tpu.pipeline_mode<synchronous>, transform_indices = @transform_3, window_bounds = array<i64: 32, 5>}, {pipeline_mode = #tpu.pipeline_mode<synchronous>, transform_indices = @transform_4, window_bounds = array<i64: 32, 1>}, {pipeline_mode = #tpu.pipeline_mode<synchronous>, transform_indices = @transform_5, window_bounds = array<i64: 32, 32>}, {pipeline_mode = #tpu.pipeline_mode<synchronous>, transform_indices = @transform_6, window_bounds = array<i64: 32, 1>}, {pipeline_mode = #tpu.pipeline_mode<synchronous>, transform_indices = @transform_7, window_bounds = array<i64: 32, 1>}, {pipeline_mode = #tpu.pipeline_mode<synchronous>, transform_indices = @transform_8, window_bounds = array<i64: 1, 1>}, {transform_indices = @transform_9, window_bounds = array<i64: 1, 1, 128>}]} {
    %c0_i32 = arith.constant 0 : i32
    %0 = arith.cmpi eq, %arg1, %c0_i32 : i32
    %1 = arith.extui %0 : i1 to i32
    %c0_i32_0 = arith.constant 0 : i32
    %2 = arith.cmpi ne, %1, %c0_i32_0 : i32
    scf.if %2 {
      %cst_65 = arith.constant 0.000000e+00 : f32
      %202 = vector.broadcast %cst_65 : f32 to vector<1x128xf32>
      %c0_66 = arith.constant 0 : index
      %c0_67 = arith.constant 0 : index
      %203 = vector.load %arg12[%c0_66, %c0_67] : memref<1x128xf32, #tpu.memory_space<vmem>>, vector<1x128xf32>
      tpu.vector_store %arg12[%c0_66, %c0_67], %202 {strides = array<i32>} : memref<1x128xf32, #tpu.memory_space<vmem>>, vector<1x128xf32>,
    } else {
    }
    %c1_i32 = arith.constant 1 : i32
    %3 = arith.muli %arg0, %c1_i32 : i32
    %4 = arith.addi %3, %arg1 : i32
    %c256_i32 = arith.constant 256 : i32
    %5 = arith.muli %4, %c256_i32 : i32
    %c0 = arith.constant 0 : index
    %c0_1 = arith.constant 0 : index
    %6 = vector.load %arg5[%c0, %c0_1] : memref<32x5xf32, #tpu.memory_space<vmem>>, vector<32x5xf32>
    %7 = vector.extract_strided_slice %6 {offsets = [0, 0], sizes = [32, 1], strides = [1, 1]} : vector<32x5xf32> to vector<32x1xf32>
    %8 = vector.extract_strided_slice %6 {offsets = [0, 1], sizes = [32, 1], strides = [1, 1]} : vector<32x5xf32> to vector<32x1xf32>
    %9 = vector.extract_strided_slice %6 {offsets = [0, 2], sizes = [32, 1], strides = [1, 1]} : vector<32x5xf32> to vector<32x1xf32>
    %10 = vector.extract_strided_slice %6 {offsets = [0, 3], sizes = [32, 1], strides = [1, 1]} : vector<32x5xf32> to vector<32x1xf32>
    %11 = vector.extract_strided_slice %6 {offsets = [0, 4], sizes = [32, 1], strides = [1, 1]} : vector<32x5xf32> to vector<32x1xf32>
    %c0_2 = arith.constant 0 : index
    %c0_3 = arith.constant 0 : index
    %12 = vector.load %arg6[%c0_2, %c0_3] : memref<32x1xf32, #tpu.memory_space<vmem>>, vector<32x1xf32>
    %c0_4 = arith.constant 0 : index
    %c0_5 = arith.constant 0 : index
    %13 = vector.load %arg7[%c0_4, %c0_5] : memref<32x32xf32, #tpu.memory_space<vmem>>, vector<32x32xf32>
    %14 = arith.truncf %13 : vector<32x32xf32> to vector<32x32xbf16>
    %c0_6 = arith.constant 0 : index
    %c0_7 = arith.constant 0 : index
    %15 = vector.load %arg8[%c0_6, %c0_7] : memref<32x1xf32, #tpu.memory_space<vmem>>, vector<32x1xf32>
    %c0_8 = arith.constant 0 : index
    %c0_9 = arith.constant 0 : index
    %16 = vector.load %arg9[%c0_8, %c0_9] : memref<32x1xf32, #tpu.memory_space<vmem>>, vector<32x1xf32>
    %c0_10 = arith.constant 0 : index
    %c0_11 = arith.constant 0 : index
    %17 = vector.load %arg10[%c0_10, %c0_11] : memref<1x1xf32, #tpu.memory_space<vmem>>, vector<1x1xf32>
    %18 = tpu.iota {dimensions = array<i32: 1>} : vector<1x128xi32>
    %c0_i32_12 = arith.constant 0 : i32
    %c128_i32 = arith.constant 128 : i32
    %19 = arith.muli %c0_i32_12, %c128_i32 : i32
    %20 = tpu.assume_multiple %19, 128 : i32
    %c0_13 = arith.constant 0 : index
    %21 = arith.index_cast %20 : i32 to index
    %22 = vector.load %arg2[%c0_13, %21] : memref<1x256xf32, #tpu.memory_space<vmem>>, vector<1x128xf32>
    %c0_14 = arith.constant 0 : index
    %23 = arith.index_cast %20 : i32 to index
    %24 = vector.load %arg3[%c0_14, %23] : memref<1x256xf32, #tpu.memory_space<vmem>>, vector<1x128xf32>
    %c0_15 = arith.constant 0 : index
    %25 = arith.index_cast %20 : i32 to index
    %26 = vector.load %arg4[%c0_15, %25] : memref<1x256xf32, #tpu.memory_space<vmem>>, vector<1x128xf32>
    %27 = vector.broadcast %7 : vector<32x1xf32> to vector<32x128xf32>
    %28 = vector.broadcast %22 : vector<1x128xf32> to vector<32x128xf32>
    %29 = arith.mulf %27, %28 : vector<32x128xf32>
    %30 = vector.broadcast %8 : vector<32x1xf32> to vector<32x128xf32>
    %31 = vector.broadcast %24 : vector<1x128xf32> to vector<32x128xf32>
    %32 = arith.mulf %30, %31 : vector<32x128xf32>
    %33 = arith.addf %29, %32 : vector<32x128xf32>
    %34 = arith.subf %22, %24 : vector<1x128xf32>
    %35 = vector.broadcast %9 : vector<32x1xf32> to vector<32x128xf32>
    %36 = vector.broadcast %34 : vector<1x128xf32> to vector<32x128xf32>
    %37 = arith.mulf %35, %36 : vector<32x128xf32>
    %38 = arith.addf %33, %37 : vector<32x128xf32>
    %cst = arith.constant 1.000000e-01 : f32
    %39 = vector.broadcast %cst : f32 to vector<1x128xf32>
    %40 = arith.addf %24, %39 : vector<1x128xf32>
    %41 = arith.divf %22, %40 : vector<1x128xf32>
    %42 = vector.broadcast %10 : vector<32x1xf32> to vector<32x128xf32>
    %43 = vector.broadcast %41 : vector<1x128xf32> to vector<32x128xf32>
    %44 = arith.mulf %42, %43 : vector<32x128xf32>
    %45 = arith.addf %38, %44 : vector<32x128xf32>
    %cst_16 = arith.constant 1.000000e-01 : f32
    %46 = vector.broadcast %cst_16 : f32 to vector<1x128xf32>
    %47 = arith.addf %22, %46 : vector<1x128xf32>
    %48 = arith.divf %24, %47 : vector<1x128xf32>
    %49 = vector.broadcast %11 : vector<32x1xf32> to vector<32x128xf32>
    %50 = vector.broadcast %48 : vector<1x128xf32> to vector<32x128xf32>
    %51 = arith.mulf %49, %50 : vector<32x128xf32>
    %52 = arith.addf %45, %51 : vector<32x128xf32>
    %53 = vector.broadcast %12 : vector<32x1xf32> to vector<32x128xf32>
    %54 = arith.addf %52, %53 : vector<32x128xf32>
    %cst_17 = arith.constant 0.000000e+00 : f32
    %55 = vector.broadcast %cst_17 : f32 to vector<32x128xf32>
    %56 = arith.cmpf ogt, %54, %55 : vector<32x128xf32>
    %cst_18 = arith.constant 2.000000e-01 : f32
    %57 = vector.broadcast %cst_18 : f32 to vector<32x128xf32>
    %58 = arith.mulf %57, %54 : vector<32x128xf32>
    %59 = arith.select %56, %54, %58 : vector<32x128xi1>, vector<32x128xf32>
    %60 = arith.truncf %59 : vector<32x128xf32> to vector<32x128xbf16>
    %cst_19 = arith.constant dense<0.000000e+00> : vector<32x128xf32>
    %61 = tpu.matmul %14, %60, %cst_19 {dimension_numbers = #tpu.dot_dimension_numbers<[1], [0], [0], [1], [0, 0, 1, 1], [], []>} : vector<32x32xbf16>, vector<32x128xbf16>, vector<32x128xf32> -> vector<32x128xf32>
    %62 = vector.broadcast %15 : vector<32x1xf32> to vector<32x128xf32>
    %63 = arith.addf %61, %62 : vector<32x128xf32>
    %cst_20 = arith.constant 0.000000e+00 : f32
    %64 = vector.broadcast %cst_20 : f32 to vector<32x128xf32>
    %65 = arith.cmpf ogt, %63, %64 : vector<32x128xf32>
    %cst_21 = arith.constant 2.000000e-01 : f32
    %66 = vector.broadcast %cst_21 : f32 to vector<32x128xf32>
    %67 = arith.mulf %66, %63 : vector<32x128xf32>
    %68 = arith.select %65, %63, %67 : vector<32x128xi1>, vector<32x128xf32>
    %69 = vector.broadcast %16 : vector<32x1xf32> to vector<32x128xf32>
    %70 = arith.mulf %69, %68 : vector<32x128xf32>
    %cst_22 = arith.constant dense<0.000000e+00> : vector<128xf32>
    %71 = vector.multi_reduction <add>, %70, %cst_22 [0] : vector<32x128xf32> to vector<128xf32>
    %72 = vector.shape_cast %71 : vector<128xf32> to vector<1x128xf32>
    %73 = vector.broadcast %17 : vector<1x1xf32> to vector<1x128xf32>
    %74 = arith.addf %72, %73 : vector<1x128xf32>
    %cst_23 = arith.constant 1.000000e+00 : f32
    %75 = vector.broadcast %cst_23 : f32 to vector<1x128xf32>
    %76 = arith.addf %26, %75 : vector<1x128xf32>
    %cst_24 = arith.constant 5.000000e-01 : f32
    %77 = vector.broadcast %cst_24 : f32 to vector<1x128xf32>
    %78 = arith.mulf %76, %77 : vector<1x128xf32>
    %cst_25 = arith.constant 0.000000e+00 : f32
    %79 = vector.broadcast %cst_25 : f32 to vector<1x128xf32>
    %80 = arith.maximumf %74, %79 : vector<1x128xf32>
    %81 = math.absf %74 : vector<1x128xf32>
    %cst_26 = arith.constant 0.000000e+00 : f32
    %82 = vector.broadcast %cst_26 : f32 to vector<1x128xf32>
    %83 = arith.subf %82, %81 : vector<1x128xf32>
    %84 = math.exp %83 : vector<1x128xf32>
    %cst_27 = arith.constant 1.000000e+00 : f32
    %85 = vector.broadcast %cst_27 : f32 to vector<1x128xf32>
    %86 = arith.addf %85, %84 : vector<1x128xf32>
    %87 = math.log %86 : vector<1x128xf32>
    %88 = arith.addf %80, %87 : vector<1x128xf32>
    %89 = arith.subf %88, %74 : vector<1x128xf32>
    %cst_28 = arith.constant 1.000000e+02 : f32
    %90 = vector.broadcast %cst_28 : f32 to vector<1x128xf32>
    %91 = arith.minimumf %89, %90 : vector<1x128xf32>
    %92 = arith.mulf %78, %91 : vector<1x128xf32>
    %cst_29 = arith.constant 1.000000e+00 : f32
    %93 = vector.broadcast %cst_29 : f32 to vector<1x128xf32>
    %94 = arith.subf %93, %78 : vector<1x128xf32>
    %cst_30 = arith.constant 1.000000e+02 : f32
    %95 = vector.broadcast %cst_30 : f32 to vector<1x128xf32>
    %96 = arith.minimumf %88, %95 : vector<1x128xf32>
    %97 = arith.mulf %94, %96 : vector<1x128xf32>
    %98 = arith.addf %92, %97 : vector<1x128xf32>
    %99 = arith.addi %5, %20 : i32
    %100 = vector.broadcast %99 : i32 to vector<1x128xi32>
    %101 = arith.addi %100, %18 : vector<1x128xi32>
    %c480_i32 = arith.constant 480 : i32
    %102 = vector.broadcast %c480_i32 : i32 to vector<1x128xi32>
    %103 = arith.cmpi slt, %101, %102 : vector<1x128xi32>
    %c0_31 = arith.constant 0 : index
    %c0_32 = arith.constant 0 : index
    %104 = vector.load %arg12[%c0_31, %c0_32] : memref<1x128xf32, #tpu.memory_space<vmem>>, vector<1x128xf32>
    %cst_33 = arith.constant 0.000000e+00 : f32
    %105 = vector.broadcast %cst_33 : f32 to vector<1x128xf32>
    %106 = arith.select %103, %98, %105 : vector<1x128xi1>, vector<1x128xf32>
    %107 = arith.addf %104, %106 : vector<1x128xf32>
    %c0_34 = arith.constant 0 : index
    %c0_35 = arith.constant 0 : index
    %108 = vector.load %arg12[%c0_34, %c0_35] : memref<1x128xf32, #tpu.memory_space<vmem>>, vector<1x128xf32>
    tpu.vector_store %arg12[%c0_34, %c0_35], %107 {strides = array<i32>} : memref<1x128xf32, #tpu.memory_space<vmem>>, vector<1x128xf32>,
    %c1_i32_36 = arith.constant 1 : i32
    %c128_i32_37 = arith.constant 128 : i32
    %109 = arith.muli %c1_i32_36, %c128_i32_37 : i32
    %110 = tpu.assume_multiple %109, 128 : i32
    %c0_38 = arith.constant 0 : index
    %111 = arith.index_cast %110 : i32 to index
    %112 = vector.load %arg2[%c0_38, %111] : memref<1x256xf32, #tpu.memory_space<vmem>>, vector<1x128xf32>
    %c0_39 = arith.constant 0 : index
    %113 = arith.index_cast %110 : i32 to index
    %114 = vector.load %arg3[%c0_39, %113] : memref<1x256xf32, #tpu.memory_space<vmem>>, vector<1x128xf32>
    %c0_40 = arith.constant 0 : index
    %115 = arith.index_cast %110 : i32 to index
    %116 = vector.load %arg4[%c0_40, %115] : memref<1x256xf32, #tpu.memory_space<vmem>>, vector<1x128xf32>
    %117 = vector.broadcast %7 : vector<32x1xf32> to vector<32x128xf32>
    %118 = vector.broadcast %112 : vector<1x128xf32> to vector<32x128xf32>
    %119 = arith.mulf %117, %118 : vector<32x128xf32>
    %120 = vector.broadcast %8 : vector<32x1xf32> to vector<32x128xf32>
    %121 = vector.broadcast %114 : vector<1x128xf32> to vector<32x128xf32>
    %122 = arith.mulf %120, %121 : vector<32x128xf32>
    %123 = arith.addf %119, %122 : vector<32x128xf32>
    %124 = arith.subf %112, %114 : vector<1x128xf32>
    %125 = vector.broadcast %9 : vector<32x1xf32> to vector<32x128xf32>
    %126 = vector.broadcast %124 : vector<1x128xf32> to vector<32x128xf32>
    %127 = arith.mulf %125, %126 : vector<32x128xf32>
    %128 = arith.addf %123, %127 : vector<32x128xf32>
    %cst_41 = arith.constant 1.000000e-01 : f32
    %129 = vector.broadcast %cst_41 : f32 to vector<1x128xf32>
    %130 = arith.addf %114, %129 : vector<1x128xf32>
    %131 = arith.divf %112, %130 : vector<1x128xf32>
    %132 = vector.broadcast %10 : vector<32x1xf32> to vector<32x128xf32>
    %133 = vector.broadcast %131 : vector<1x128xf32> to vector<32x128xf32>
    %134 = arith.mulf %132, %133 : vector<32x128xf32>
    %135 = arith.addf %128, %134 : vector<32x128xf32>
    %cst_42 = arith.constant 1.000000e-01 : f32
    %136 = vector.broadcast %cst_42 : f32 to vector<1x128xf32>
    %137 = arith.addf %112, %136 : vector<1x128xf32>
    %138 = arith.divf %114, %137 : vector<1x128xf32>
    %139 = vector.broadcast %11 : vector<32x1xf32> to vector<32x128xf32>
    %140 = vector.broadcast %138 : vector<1x128xf32> to vector<32x128xf32>
    %141 = arith.mulf %139, %140 : vector<32x128xf32>
    %142 = arith.addf %135, %141 : vector<32x128xf32>
    %143 = vector.broadcast %12 : vector<32x1xf32> to vector<32x128xf32>
    %144 = arith.addf %142, %143 : vector<32x128xf32>
    %cst_43 = arith.constant 0.000000e+00 : f32
    %145 = vector.broadcast %cst_43 : f32 to vector<32x128xf32>
    %146 = arith.cmpf ogt, %144, %145 : vector<32x128xf32>
    %cst_44 = arith.constant 2.000000e-01 : f32
    %147 = vector.broadcast %cst_44 : f32 to vector<32x128xf32>
    %148 = arith.mulf %147, %144 : vector<32x128xf32>
    %149 = arith.select %146, %144, %148 : vector<32x128xi1>, vector<32x128xf32>
    %150 = arith.truncf %149 : vector<32x128xf32> to vector<32x128xbf16>
    %cst_45 = arith.constant dense<0.000000e+00> : vector<32x128xf32>
    %151 = tpu.matmul %14, %150, %cst_45 {dimension_numbers = #tpu.dot_dimension_numbers<[1], [0], [0], [1], [0, 0, 1, 1], [], []>} : vector<32x32xbf16>, vector<32x128xbf16>, vector<32x128xf32> -> vector<32x128xf32>
    %152 = vector.broadcast %15 : vector<32x1xf32> to vector<32x128xf32>
    %153 = arith.addf %151, %152 : vector<32x128xf32>
    %cst_46 = arith.constant 0.000000e+00 : f32
    %154 = vector.broadcast %cst_46 : f32 to vector<32x128xf32>
    %155 = arith.cmpf ogt, %153, %154 : vector<32x128xf32>
    %cst_47 = arith.constant 2.000000e-01 : f32
    %156 = vector.broadcast %cst_47 : f32 to vector<32x128xf32>
    %157 = arith.mulf %156, %153 : vector<32x128xf32>
    %158 = arith.select %155, %153, %157 : vector<32x128xi1>, vector<32x128xf32>
    %159 = vector.broadcast %16 : vector<32x1xf32> to vector<32x128xf32>
    %160 = arith.mulf %159, %158 : vector<32x128xf32>
    %cst_48 = arith.constant dense<0.000000e+00> : vector<128xf32>
    %161 = vector.multi_reduction <add>, %160, %cst_48 [0] : vector<32x128xf32> to vector<128xf32>
    %162 = vector.shape_cast %161 : vector<128xf32> to vector<1x128xf32>
    %163 = vector.broadcast %17 : vector<1x1xf32> to vector<1x128xf32>
    %164 = arith.addf %162, %163 : vector<1x128xf32>
    %cst_49 = arith.constant 1.000000e+00 : f32
    %165 = vector.broadcast %cst_49 : f32 to vector<1x128xf32>
    %166 = arith.addf %116, %165 : vector<1x128xf32>
    %cst_50 = arith.constant 5.000000e-01 : f32
    %167 = vector.broadcast %cst_50 : f32 to vector<1x128xf32>
    %168 = arith.mulf %166, %167 : vector<1x128xf32>
    %cst_51 = arith.constant 0.000000e+00 : f32
    %169 = vector.broadcast %cst_51 : f32 to vector<1x128xf32>
    %170 = arith.maximumf %164, %169 : vector<1x128xf32>
    %171 = math.absf %164 : vector<1x128xf32>
    %cst_52 = arith.constant 0.000000e+00 : f32
    %172 = vector.broadcast %cst_52 : f32 to vector<1x128xf32>
    %173 = arith.subf %172, %171 : vector<1x128xf32>
    %174 = math.exp %173 : vector<1x128xf32>
    %cst_53 = arith.constant 1.000000e+00 : f32
    %175 = vector.broadcast %cst_53 : f32 to vector<1x128xf32>
    %176 = arith.addf %175, %174 : vector<1x128xf32>
    %177 = math.log %176 : vector<1x128xf32>
    %178 = arith.addf %170, %177 : vector<1x128xf32>
    %179 = arith.subf %178, %164 : vector<1x128xf32>
    %cst_54 = arith.constant 1.000000e+02 : f32
    %180 = vector.broadcast %cst_54 : f32 to vector<1x128xf32>
    %181 = arith.minimumf %179, %180 : vector<1x128xf32>
    %182 = arith.mulf %168, %181 : vector<1x128xf32>
    %cst_55 = arith.constant 1.000000e+00 : f32
    %183 = vector.broadcast %cst_55 : f32 to vector<1x128xf32>
    %184 = arith.subf %183, %168 : vector<1x128xf32>
    %cst_56 = arith.constant 1.000000e+02 : f32
    %185 = vector.broadcast %cst_56 : f32 to vector<1x128xf32>
    %186 = arith.minimumf %178, %185 : vector<1x128xf32>
    %187 = arith.mulf %184, %186 : vector<1x128xf32>
    %188 = arith.addf %182, %187 : vector<1x128xf32>
    %189 = arith.addi %5, %110 : i32
    %190 = vector.broadcast %189 : i32 to vector<1x128xi32>
    %191 = arith.addi %190, %18 : vector<1x128xi32>
    %c480_i32_57 = arith.constant 480 : i32
    %192 = vector.broadcast %c480_i32_57 : i32 to vector<1x128xi32>
    %193 = arith.cmpi slt, %191, %192 : vector<1x128xi32>
    %c0_58 = arith.constant 0 : index
    %c0_59 = arith.constant 0 : index
    %194 = vector.load %arg12[%c0_58, %c0_59] : memref<1x128xf32, #tpu.memory_space<vmem>>, vector<1x128xf32>
    %cst_60 = arith.constant 0.000000e+00 : f32
    %195 = vector.broadcast %cst_60 : f32 to vector<1x128xf32>
    %196 = arith.select %193, %188, %195 : vector<1x128xi1>, vector<1x128xf32>
    %197 = arith.addf %194, %196 : vector<1x128xf32>
    %c0_61 = arith.constant 0 : index
    %c0_62 = arith.constant 0 : index
    %198 = vector.load %arg12[%c0_61, %c0_62] : memref<1x128xf32, #tpu.memory_space<vmem>>, vector<1x128xf32>
    tpu.vector_store %arg12[%c0_61, %c0_62], %197 {strides = array<i32>} : memref<1x128xf32, #tpu.memory_space<vmem>>, vector<1x128xf32>,
    %c2_i32 = arith.constant 2 : i32
    %c0_i32_63 = arith.constant 0 : i32
    %199 = arith.cmpi eq, %arg1, %c0_i32_63 : i32
    %200 = arith.extui %199 : i1 to i32
    %c0_i32_64 = arith.constant 0 : i32
    %201 = arith.cmpi ne, %200, %c0_i32_64 : i32
    scf.if %201 {
      %c0_65 = arith.constant 0 : index
      %c0_66 = arith.constant 0 : index
      %202 = vector.load %arg12[%c0_65, %c0_66] : memref<1x128xf32, #tpu.memory_space<vmem>>, vector<1x128xf32>
      %203 = vector.shape_cast %202 : vector<1x128xf32> to vector<1x1x128xf32>
      %c0_67 = arith.constant 0 : index
      %c0_68 = arith.constant 0 : index
      %c0_69 = arith.constant 0 : index
      %204 = vector.load %arg11[%c0_67, %c0_68, %c0_69] : memref<1x1x128xf32, #tpu.memory_space<vmem>>, vector<1x1x128xf32>
      tpu.vector_store %arg11[%c0_67, %c0_68, %c0_69], %203 {strides = array<i32>} : memref<1x1x128xf32, #tpu.memory_space<vmem>>, vector<1x1x128xf32>,
    } else {
    }
    return
  }
  func.func @transform_0(%arg0: i32, %arg1: i32) -> (i32, i32) {
    %c1_i32 = arith.constant 1 : i32
    %0 = arith.muli %arg0, %c1_i32 : i32
    %1 = arith.addi %0, %arg1 : i32
    %c1_i32_0 = arith.constant 1 : i32
    %2 = arith.minsi %1, %c1_i32_0 : i32
    %c0_i32 = arith.constant 0 : i32
    %c0_i32_1 = arith.constant 0 : i32
    return %c0_i32, %2 : i32, i32
  }
  func.func @transform_1(%arg0: i32, %arg1: i32) -> (i32, i32) {
    %c1_i32 = arith.constant 1 : i32
    %0 = arith.muli %arg0, %c1_i32 : i32
    %1 = arith.addi %0, %arg1 : i32
    %c1_i32_0 = arith.constant 1 : i32
    %2 = arith.minsi %1, %c1_i32_0 : i32
    %c0_i32 = arith.constant 0 : i32
    %c0_i32_1 = arith.constant 0 : i32
    return %c0_i32, %2 : i32, i32
  }
  func.func @transform_2(%arg0: i32, %arg1: i32) -> (i32, i32) {
    %c1_i32 = arith.constant 1 : i32
    %0 = arith.muli %arg0, %c1_i32 : i32
    %1 = arith.addi %0, %arg1 : i32
    %c1_i32_0 = arith.constant 1 : i32
    %2 = arith.minsi %1, %c1_i32_0 : i32
    %c0_i32 = arith.constant 0 : i32
    %c0_i32_1 = arith.constant 0 : i32
    return %c0_i32, %2 : i32, i32
  }
  func.func @transform_3(%arg0: i32, %arg1: i32) -> (i32, i32) {
    %c0_i32 = arith.constant 0 : i32
    %c0_i32_0 = arith.constant 0 : i32
    %c0_i32_1 = arith.constant 0 : i32
    return %c0_i32, %c0_i32_0 : i32, i32
  }
  func.func @transform_4(%arg0: i32, %arg1: i32) -> (i32, i32) {
    %c0_i32 = arith.constant 0 : i32
    %c0_i32_0 = arith.constant 0 : i32
    %c0_i32_1 = arith.constant 0 : i32
    return %c0_i32, %c0_i32_0 : i32, i32
  }
  func.func @transform_5(%arg0: i32, %arg1: i32) -> (i32, i32) {
    %c0_i32 = arith.constant 0 : i32
    %c0_i32_0 = arith.constant 0 : i32
    %c0_i32_1 = arith.constant 0 : i32
    return %c0_i32, %c0_i32_0 : i32, i32
  }
  func.func @transform_6(%arg0: i32, %arg1: i32) -> (i32, i32) {
    %c0_i32 = arith.constant 0 : i32
    %c0_i32_0 = arith.constant 0 : i32
    %c0_i32_1 = arith.constant 0 : i32
    return %c0_i32, %c0_i32_0 : i32, i32
  }
  func.func @transform_7(%arg0: i32, %arg1: i32) -> (i32, i32) {
    %c0_i32 = arith.constant 0 : i32
    %c0_i32_0 = arith.constant 0 : i32
    %c0_i32_1 = arith.constant 0 : i32
    return %c0_i32, %c0_i32_0 : i32, i32
  }
  func.func @transform_8(%arg0: i32, %arg1: i32) -> (i32, i32) {
    %c0_i32 = arith.constant 0 : i32
    %c0_i32_0 = arith.constant 0 : i32
    %c0_i32_1 = arith.constant 0 : i32
    return %c0_i32, %c0_i32_0 : i32, i32
  }
  func.func @transform_9(%arg0: i32, %arg1: i32) -> (i32, i32, i32) {
    %c0_i32 = arith.constant 0 : i32
    %c0_i32_0 = arith.constant 0 : i32
    %c0_i32_1 = arith.constant 0 : i32
    return %arg0, %c0_i32, %c0_i32_0 : i32, i32, i32
  }
}

</mosaic_0001>

<llo_original>
// kernel: bce_ranking_loss.1
$region0: #{bce_ranking_loss.1}
  #allocation0 [shape = 'u32[]', space=smem, size = 0x4, offset = 0x4, fixed_abs, tag = 'smem constant byte address 0x4 - core index']
  #allocation1 [shape = 'u32[72,128]{1,0:T(1,128)}', space=vmem, size = 0x9000, scoped, tag = 'internal scratch']
  #allocation2 [shape = 'f32[1,128]{1,0:T(1,128)}', space=vmem, size = 0x200, scoped, tag = 'scratch operand']
  #allocation3 [shape = 'f32[1,1]{1,0:T(1,128)S(1)}', space=vmem, size = 0x200, scoped, tag = 'scoped memory for bce_ranking_loss.1']
  %s0 = inlined_call_operand.vmem [shape: f32[1,480], index: 0, kind: input, shape index: {}]
  %s1 = inlined_call_operand.vmem [shape: f32[1,480], index: 1, kind: input, shape index: {}]
  %s2 = inlined_call_operand.vmem [shape: f32[1,480], index: 2, kind: input, shape index: {}]
  %s3 = inlined_call_operand.vmem [shape: f32[32,5], index: 3, kind: input, shape index: {}]
  %s4 = inlined_call_operand.vmem [shape: f32[32,1], index: 4, kind: input, shape index: {}]
  %s5 = inlined_call_operand.vmem [shape: f32[32,32], index: 5, kind: input, shape index: {}]
  %s6 = inlined_call_operand.vmem [shape: f32[32,1], index: 6, kind: input, shape index: {}]
  %s7 = inlined_call_operand.vmem [shape: f32[32,1], index: 7, kind: input, shape index: {}]
  %s8 = inlined_call_operand.<no memory space> [shape: f32[1,1], index: 8, kind: input, shape index: {}]
  %s9 = inlined_call_operand.vmem [shape: f32[2,1,128], index: 9, kind: output, shape index: {}]
  %s10 = sld [smem:[#allocation0]]
  $region77: #{bce_ranking_loss.1} parent=0
    _
  %s12 = ssub.s32 1, %s10
  %s13 = scalar_select 0, %s12, %s10
  %v14 = vstv %s8
  %15 = vst [vmem:[#allocation3] sm:$0x1] %v14
  loop: start=0, step=1, limit=4
  $region2: #{bce_ranking_loss.1} parent=0 // loop_pre_header
    _
  $region3: #{bce_ranking_loss.1} parent=0 // loop_header
    %s17 = sphi 0, %s21
    %p18 = scmp.ge.s32.totalorder %s17, 4
    %s24 = sphi 0, %s36
    %s25 = sphi 0, %s32
    %s26 = sphi 0, %s24
    %s27 = sphi 0, %s25
    %s28 = sphi 0, %s26
    %s29 = sphi 0, %s27
    %s45 = sphi 0, %s47
    %s48 = sphi 0, %s45
    %s49 = sphi 0, %s48
    %s65 = sphi 0, %s49
    %s77 = sphi 0, %s79
    %s80 = sphi 0, %s77
    %s81 = sphi 0, %s80
    %s97 = sphi 0, %s81
    %s109 = sphi 0, %s111
    %s112 = sphi 0, %s109
    %s113 = sphi 0, %s112
    %s129 = sphi 0, %s113
    %s133 = sphi 0, %s133
    %s135 = sphi 0, %s133
    %s136 = sphi 0, %s135
    %s150 = sphi 0, %s136
    %s154 = sphi 0, %s154
    %s156 = sphi 0, %s154
    %s157 = sphi 0, %s156
    %s171 = sphi 0, %s157
    %s175 = sphi 0, %s175
    %s177 = sphi 0, %s175
    %s178 = sphi 0, %s177
    %s192 = sphi 0, %s178
    %s196 = sphi 0, %s196
    %s198 = sphi 0, %s196
    %s199 = sphi 0, %s198
    %s213 = sphi 0, %s199
    %s217 = sphi 0, %s217
    %s219 = sphi 0, %s217
    %s220 = sphi 0, %s219
    %s234 = sphi 0, %s220
    %s238 = sphi 0, %s238
    %s240 = sphi 0, %s238
    %s241 = sphi 0, %s240
    %s255 = sphi 0, %s241
    %s261 = sphi 0, %s263
    %s264 = sphi 0, %s261
    %s265 = sphi 0, %s264
    %s281 = sphi 0, %s265
  $region4: #{bce_ranking_loss.1} parent=0 // loop_header_branch
    %20 = sbr.rel (%p18) target = $region8
  $region5: #{bce_ranking_loss.1} parent=0 // loop_body
    %s22 = ssub.s32 %s17, 1
    %s23 = ssub.s32 %s17, 2
    %s30 = sadd.s32 1, %s25
    %p31 = scmp.ge.s32.totalorder %s30, 1
    %s32 = scalar_select %p31, 0, %s30
    %s33 = sadd.s32 1, %s24
    %s34 = scalar_select %p31, %s33, %s24
    %p35 = scmp.ge.s32.totalorder %s34, 2
    %s36 = scalar_select %p35, 0, %s34
    %s37 = sadd.s32 %s24, %s25
    %p38 = scmp.lt.s32.totalorder %s37, 1
    %s39 = scalar_select %p38, %s37, 1
    %s40 = sadd.s32 %s36, %s32
    %p41 = scmp.lt.s32.totalorder %s40, 1
    %s42 = scalar_select %p41, %s40, 1
    %s43 = ssub.s32 %s39, %s42
    %p44 = scmp.eq.s32.totalorder %s43, 0
    %s46 = sadd.s32 %s45, 1
    %s47 = scalar_select %p44, %s45, %s46
    %p50 = pneg %p44
    %p51 = scmp.eq.s32.totalorder %s17, 1
    %p52 = por %p50, %p51
    %p53 = scmp.ne.s32.totalorder %s45, %s48
    %p54 = scmp.eq.s32.totalorder %s17, 0
    %p55 = por %p53, %p54
    %p56 = scmp.ne.s32.totalorder %s45, %s48
    %p57 = scmp.eq.s32.totalorder %s22, 1
    %p58 = por %p56, %p57
    %p59 = scmp.ne.s32.totalorder %s48, %s49
    %p60 = scmp.eq.s32.totalorder %s22, 0
    %p61 = por %p59, %p60
    %p62 = scmp.ne.s32.totalorder %s48, %s49
    %p63 = scmp.eq.s32.totalorder %s23, 1
    %p64 = por %p62, %p63
    %p66 = scmp.ne.s32.totalorder %s49, %s65
    %p67 = scmp.eq.s32.totalorder %s23, 0
    %p68 = por %p66, %p67
    %s69 = sadd.s32 %s24, %s25
    %p70 = scmp.lt.s32.totalorder %s69, 1
    %s71 = scalar_select %p70, %s69, 1
    %s72 = sadd.s32 %s36, %s32
    %p73 = scmp.lt.s32.totalorder %s72, 1
    %s74 = scalar_select %p73, %s72, 1
    %s75 = ssub.s32 %s71, %s74
    %p76 = scmp.eq.s32.totalorder %s75, 0
    %s78 = sadd.s32 %s77, 1
    %s79 = scalar_select %p76, %s77, %s78
    %p82 = pneg %p76
    %p83 = scmp.eq.s32.totalorder %s17, 1
    %p84 = por %p82, %p83
    %p85 = scmp.ne.s32.totalorder %s77, %s80
    %p86 = scmp.eq.s32.totalorder %s17, 0
    %p87 = por %p85, %p86
    %p88 = scmp.ne.s32.totalorder %s77, %s80
    %p89 = scmp.eq.s32.totalorder %s22, 1
    %p90 = por %p88, %p89
    %p91 = scmp.ne.s32.totalorder %s80, %s81
    %p92 = scmp.eq.s32.totalorder %s22, 0
    %p93 = por %p91, %p92
    %p94 = scmp.ne.s32.totalorder %s80, %s81
    %p95 = scmp.eq.s32.totalorder %s23, 1
    %p96 = por %p94, %p95
    %p98 = scmp.ne.s32.totalorder %s81, %s97
    %p99 = scmp.eq.s32.totalorder %s23, 0
    %p100 = por %p98, %p99
    %s101 = sadd.s32 %s24, %s25
    %p102 = scmp.lt.s32.totalorder %s101, 1
    %s103 = scalar_select %p102, %s101, 1
    %s104 = sadd.s32 %s36, %s32
    %p105 = scmp.lt.s32.totalorder %s104, 1
    %s106 = scalar_select %p105, %s104, 1
    %s107 = ssub.s32 %s103, %s106
    %p108 = scmp.eq.s32.totalorder %s107, 0
    %s110 = sadd.s32 %s109, 1
    %s111 = scalar_select %p108, %s109, %s110
    %p114 = pneg %p108
    %p115 = scmp.eq.s32.totalorder %s17, 1
    %p116 = por %p114, %p115
    %p117 = scmp.ne.s32.totalorder %s109, %s112
    %p118 = scmp.eq.s32.totalorder %s17, 0
    %p119 = por %p117, %p118
    %p120 = scmp.ne.s32.totalorder %s109, %s112
    %p121 = scmp.eq.s32.totalorder %s22, 1
    %p122 = por %p120, %p121
    %p123 = scmp.ne.s32.totalorder %s112, %s113
    %p124 = scmp.eq.s32.totalorder %s22, 0
    %p125 = por %p123, %p124
    %p126 = scmp.ne.s32.totalorder %s112, %s113
    %p127 = scmp.eq.s32.totalorder %s23, 1
    %p128 = por %p126, %p127
    %p130 = scmp.ne.s32.totalorder %s113, %s129
    %p131 = scmp.eq.s32.totalorder %s23, 0
    %p132 = por %p130, %p131
    %s134 = sadd.s32 %s133, 1
    %p137 = scmp.eq.s32.totalorder %s17, 1
    %p138 = scmp.ne.s32.totalorder %s133, %s135
    %p139 = scmp.eq.s32.totalorder %s17, 0
    %p140 = por %p138, %p139
    %p141 = scmp.ne.s32.totalorder %s133, %s135
    %p142 = scmp.eq.s32.totalorder %s22, 1
    %p143 = por %p141, %p142
    %p144 = scmp.ne.s32.totalorder %s135, %s136
    %p145 = scmp.eq.s32.totalorder %s22, 0
    %p146 = por %p144, %p145
    %p147 = scmp.ne.s32.totalorder %s135, %s136
    %p148 = scmp.eq.s32.totalorder %s23, 1
    %p149 = por %p147, %p148
    %p151 = scmp.ne.s32.totalorder %s136, %s150
    %p152 = scmp.eq.s32.totalorder %s23, 0
    %p153 = por %p151, %p152
    %s155 = sadd.s32 %s154, 1
    %p158 = scmp.eq.s32.totalorder %s17, 1
    %p159 = scmp.ne.s32.totalorder %s154, %s156
    %p160 = scmp.eq.s32.totalorder %s17, 0
    %p161 = por %p159, %p160
    %p162 = scmp.ne.s32.totalorder %s154, %s156
    %p163 = scmp.eq.s32.totalorder %s22, 1
    %p164 = por %p162, %p163
    %p165 = scmp.ne.s32.totalorder %s156, %s157
    %p166 = scmp.eq.s32.totalorder %s22, 0
    %p167 = por %p165, %p166
    %p168 = scmp.ne.s32.totalorder %s156, %s157
    %p169 = scmp.eq.s32.totalorder %s23, 1
    %p170 = por %p168, %p169
    %p172 = scmp.ne.s32.totalorder %s157, %s171
    %p173 = scmp.eq.s32.totalorder %s23, 0
    %p174 = por %p172, %p173
    %s176 = sadd.s32 %s175, 1
    %p179 = scmp.eq.s32.totalorder %s17, 1
    %p180 = scmp.ne.s32.totalorder %s175, %s177
    %p181 = scmp.eq.s32.totalorder %s17, 0
    %p182 = por %p180, %p181
    %p183 = scmp.ne.s32.totalorder %s175, %s177
    %p184 = scmp.eq.s32.totalorder %s22, 1
    %p185 = por %p183, %p184
    %p186 = scmp.ne.s32.totalorder %s177, %s178
    %p187 = scmp.eq.s32.totalorder %s22, 0
    %p188 = por %p186, %p187
    %p189 = scmp.ne.s32.totalorder %s177, %s178
    %p190 = scmp.eq.s32.totalorder %s23, 1
    %p191 = por %p189, %p190
    %p193 = scmp.ne.s32.totalorder %s178, %s192
    %p194 = scmp.eq.s32.totalorder %s23, 0
    %p195 = por %p193, %p194
    %s197 = sadd.s32 %s196, 1
    %p200 = scmp.eq.s32.totalorder %s17, 1
    %p201 = scmp.ne.s32.totalorder %s196, %s198
    %p202 = scmp.eq.s32.totalorder %s17, 0
    %p203 = por %p201, %p202
    %p204 = scmp.ne.s32.totalorder %s196, %s198
    %p205 = scmp.eq.s32.totalorder %s22, 1
    %p206 = por %p204, %p205
    %p207 = scmp.ne.s32.totalorder %s198, %s199
    %p208 = scmp.eq.s32.totalorder %s22, 0
    %p209 = por %p207, %p208
    %p210 = scmp.ne.s32.totalorder %s198, %s199
    %p211 = scmp.eq.s32.totalorder %s23, 1
    %p212 = por %p210, %p211
    %p214 = scmp.ne.s32.totalorder %s199, %s213
    %p215 = scmp.eq.s32.totalorder %s23, 0
    %p216 = por %p214, %p215
    %s218 = sadd.s32 %s217, 1
    %p221 = scmp.eq.s32.totalorder %s17, 1
    %p222 = scmp.ne.s32.totalorder %s217, %s219
    %p223 = scmp.eq.s32.totalorder %s17, 0
    %p224 = por %p222, %p223
    %p225 = scmp.ne.s32.totalorder %s217, %s219
    %p226 = scmp.eq.s32.totalorder %s22, 1
    %p227 = por %p225, %p226
    %p228 = scmp.ne.s32.totalorder %s219, %s220
    %p229 = scmp.eq.s32.totalorder %s22, 0
    %p230 = por %p228, %p229
    %p231 = scmp.ne.s32.totalorder %s219, %s220
    %p232 = scmp.eq.s32.totalorder %s23, 1
    %p233 = por %p231, %p232
    %p235 = scmp.ne.s32.totalorder %s220, %s234
    %p236 = scmp.eq.s32.totalorder %s23, 0
    %p237 = por %p235, %p236
    %s239 = sadd.s32 %s238, 1
    %p242 = scmp.eq.s32.totalorder %s17, 1
    %p243 = scmp.ne.s32.totalorder %s238, %s240
    %p244 = scmp.eq.s32.totalorder %s17, 0
    %p245 = por %p243, %p244
    %p246 = scmp.ne.s32.totalorder %s238, %s240
    %p247 = scmp.eq.s32.totalorder %s22, 1
    %p248 = por %p246, %p247
    %p249 = scmp.ne.s32.totalorder %s240, %s241
    %p250 = scmp.eq.s32.totalorder %s22, 0
    %p251 = por %p249, %p250
    %p252 = scmp.ne.s32.totalorder %s240, %s241
    %p253 = scmp.eq.s32.totalorder %s23, 1
    %p254 = por %p252, %p253
    %p256 = scmp.ne.s32.totalorder %s241, %s255
    %p257 = scmp.eq.s32.totalorder %s23, 0
    %p258 = por %p256, %p257
    %s259 = ssub.s32 %s24, %s36
    %p260 = scmp.eq.s32.totalorder %s259, 0
    %s262 = sadd.s32 %s261, 1
    %s263 = scalar_select %p260, %s261, %s262
    %p266 = pneg %p260
    %p267 = scmp.eq.s32.totalorder %s17, 1
    %p268 = por %p266, %p267
    %p269 = scmp.ne.s32.totalorder %s261, %s264
    %p270 = scmp.eq.s32.totalorder %s17, 0
    %p271 = por %p269, %p270
    %p272 = scmp.ne.s32.totalorder %s261, %s264
    %p273 = scmp.eq.s32.totalorder %s22, 1
    %p274 = por %p272, %p273
    %p275 = scmp.ne.s32.totalorder %s264, %s265
    %p276 = scmp.eq.s32.totalorder %s22, 0
    %p277 = por %p275, %p276
    %p278 = scmp.ne.s32.totalorder %s264, %s265
    %p279 = scmp.eq.s32.totalorder %s23, 1
    %p280 = por %p278, %p279
    %p282 = scmp.ne.s32.totalorder %s265, %s281
    %p283 = scmp.eq.s32.totalorder %s23, 0
    %p284 = por %p282, %p283
    %p285 = scmp.le.s32.totalorder 1, %s17
    %p286 = scmp.lt.s32.totalorder %s17, 3
    %p287 = pnand %p285, %p286
    %p288 = pneg %p287
    // Predicated region
    $region9: #{bce_ranking_loss.1} parent=5 // pred_check
      _
    $region10: #{bce_ranking_loss.1} parent=5 // pred_check_branch
      %290 = sbr.rel (%p287) target = $region12
    $region11: #{bce_ranking_loss.1} parent=5 // pred_region
      %s291 = ssub.s32 %s17, 1
      // Predicated region
      $region13: #{bce_ranking_loss.1} parent=11 // pred_check
        %p292 = pneg %p146
      $region14: #{bce_ranking_loss.1} parent=11 // pred_check_branch
        %294 = sbr.rel (%p292) target = $region16
      $region15: #{bce_ranking_loss.1} parent=11 // pred_region
        _
      $region16: #{bce_ranking_loss.1} parent=11 // pred_fallthru
        _
      // Predicated region
      $region17: #{bce_ranking_loss.1} parent=11 // pred_check
        %p295 = pneg %p167
      $region18: #{bce_ranking_loss.1} parent=11 // pred_check_branch
        %297 = sbr.rel (%p295) target = $region20
      $region19: #{bce_ranking_loss.1} parent=11 // pred_region
        _
      $region20: #{bce_ranking_loss.1} parent=11 // pred_fallthru
        _
      // Predicated region
      $region21: #{bce_ranking_loss.1} parent=11 // pred_check
        %p298 = pneg %p188
      $region22: #{bce_ranking_loss.1} parent=11 // pred_check_branch
        %300 = sbr.rel (%p298) target = $region24
      $region23: #{bce_ranking_loss.1} parent=11 // pred_region
        _
      $region24: #{bce_ranking_loss.1} parent=11 // pred_fallthru
        _
      // Predicated region
      $region25: #{bce_ranking_loss.1} parent=11 // pred_check
        %p301 = pneg %p209
      $region26: #{bce_ranking_loss.1} parent=11 // pred_check_branch
        %303 = sbr.rel (%p301) target = $region28
      $region27: #{bce_ranking_loss.1} parent=11 // pred_region
        _
      $region28: #{bce_ranking_loss.1} parent=11 // pred_fallthru
        _
      // Predicated region
      $region29: #{bce_ranking_loss.1} parent=11 // pred_check
        %p304 = pneg %p230
      $region30: #{bce_ranking_loss.1} parent=11 // pred_check_branch
        %306 = sbr.rel (%p304) target = $region32
      $region31: #{bce_ranking_loss.1} parent=11 // pred_region
        _
      $region32: #{bce_ranking_loss.1} parent=11 // pred_fallthru
        _
      // Predicated region
      $region33: #{bce_ranking_loss.1} parent=11 // pred_check
        %p307 = pneg %p251
      $region34: #{bce_ranking_loss.1} parent=11 // pred_check_branch
        %309 = sbr.rel (%p307) target = $region36
      $region35: #{bce_ranking_loss.1} parent=11 // pred_region
        _
      $region36: #{bce_ranking_loss.1} parent=11 // pred_fallthru
        _
    $region12: #{bce_ranking_loss.1} parent=5 // pred_fallthru
      _
    %p310 = scmp.lt.s32.totalorder %s17, 2
    // Predicated region
    $region37: #{bce_ranking_loss.1} parent=5 // pred_check
      %p311 = pneg %p310
    $region38: #{bce_ranking_loss.1} parent=5 // pred_check_branch
      %313 = sbr.rel (%p311) target = $region40
    $region39: #{bce_ranking_loss.1} parent=5 // pred_region
      // Predicated region
      $region41: #{bce_ranking_loss.1} parent=39 // pred_check
        %p314 = pneg %p55
      $region42: #{bce_ranking_loss.1} parent=39 // pred_check_branch
        %316 = sbr.rel (%p314) target = $region44
      $region43: #{bce_ranking_loss.1} parent=39 // pred_region
        %s317 = sadd.s32 %s24, %s25
        %p318 = scmp.lt.s32.totalorder %s317, 1
        %s319 = scalar_select %p318, %s317, 1
        %s320 = smul.u32 2, %s319
        %p321 = scmp.lt.s32.totalorder %s320, 3
        %s322 = scalar_select %p321, %s320, 3
        %s323 = scalar_lea.vmem %s0, %s322
        %s324 = sadd.s32 %s24, %s25
        %p325 = scmp.lt.s32.totalorder %s324, 1
        %s326 = scalar_select %p325, %s324, 1
        %s327 = smul.u32 2, %s326
      $region44: #{bce_ranking_loss.1} parent=39 // pred_fallthru
        _
      // Predicated region
      $region45: #{bce_ranking_loss.1} parent=39 // pred_check
        %p328 = pneg %p87
      $region46: #{bce_ranking_loss.1} parent=39 // pred_check_branch
        %330 = sbr.rel (%p328) target = $region48
      $region47: #{bce_ranking_loss.1} parent=39 // pred_region
        %s331 = sadd.s32 %s24, %s25
        %p332 = scmp.lt.s32.totalorder %s331, 1
        %s333 = scalar_select %p332, %s331, 1
        %s334 = smul.u32 2, %s333
        %p335 = scmp.lt.s32.totalorder %s334, 3
        %s336 = scalar_select %p335, %s334, 3
        %s337 = scalar_lea.vmem %s1, %s336
        %s338 = sadd.s32 %s24, %s25
        %p339 = scmp.lt.s32.totalorder %s338, 1
        %s340 = scalar_select %p339, %s338, 1
        %s341 = smul.u32 2, %s340
      $region48: #{bce_ranking_loss.1} parent=39 // pred_fallthru
        _
      // Predicated region
      $region49: #{bce_ranking_loss.1} parent=39 // pred_check
        %p342 = pneg %p119
      $region50: #{bce_ranking_loss.1} parent=39 // pred_check_branch
        %344 = sbr.rel (%p342) target = $region52
      $region51: #{bce_ranking_loss.1} parent=39 // pred_region
        %s345 = sadd.s32 %s24, %s25
        %p346 = scmp.lt.s32.totalorder %s345, 1
        %s347 = scalar_select %p346, %s345, 1
        %s348 = smul.u32 2, %s347
        %p349 = scmp.lt.s32.totalorder %s348, 3
        %s350 = scalar_select %p349, %s348, 3
        %s351 = scalar_lea.vmem %s2, %s350
        %s352 = sadd.s32 %s24, %s25
        %p353 = scmp.lt.s32.totalorder %s352, 1
        %s354 = scalar_select %p353, %s352, 1
        %s355 = smul.u32 2, %s354
      $region52: #{bce_ranking_loss.1} parent=39 // pred_fallthru
        _
    $region40: #{bce_ranking_loss.1} parent=5 // pred_fallthru
      _
    %p356 = scmp.le.s32.totalorder 1, %s17
    %p357 = scmp.lt.s32.totalorder %s17, 3
    %p358 = pnand %p356, %p357
    %p359 = pneg %p358
    // Predicated region
    $region53: #{bce_ranking_loss.1} parent=5 // pred_check
      _
    $region54: #{bce_ranking_loss.1} parent=5 // pred_check_branch
      %361 = sbr.rel (%p358) target = $region56
    $region55: #{bce_ranking_loss.1} parent=5 // pred_region
      %s362 = ssub.s32 %s17, 1
      %s363 = sadd.s32 %s26, %s27
      %p364 = scmp.lt.s32.totalorder %s363, 1
      %s365 = scalar_select %p364, %s363, 1
      %s366 = smul.u32 2, %s365
      %p367 = scmp.lt.s32.totalorder %s366, 3
      %s368 = scalar_select %p367, %s366, 3
      %s369 = scalar_lea.vmem %s0, %s368
      %p370 = pneg %p61
      %p371 = pneg %p58
      %s372 = sadd.s32 %s26, %s27
      %p373 = scmp.lt.s32.totalorder %s372, 1
      %s374 = scalar_select %p373, %s372, 1
      %s375 = smul.u32 2, %s374
      %p376 = scmp.lt.s32.totalorder %s375, 3
      %s377 = scalar_select %p376, %s375, 3
      %s378 = scalar_lea.vmem %s1, %s377
      %p379 = pneg %p93
      %p380 = pneg %p90
      %s381 = sadd.s32 %s26, %s27
      %p382 = scmp.lt.s32.totalorder %s381, 1
      %s383 = scalar_select %p382, %s381, 1
      %s384 = smul.u32 2, %s383
      %p385 = scmp.lt.s32.totalorder %s384, 3
      %s386 = scalar_select %p385, %s384, 3
      %s387 = scalar_lea.vmem %s2, %s386
      %p388 = pneg %p125
      %p389 = pneg %p122
      %p390 = pneg %p146
      %p391 = pneg %p143
      %p392 = pneg %p167
      %p393 = pneg %p164
      %p394 = pneg %p188
      %p395 = pneg %p185
      %p396 = pneg %p209
      %p397 = pneg %p206
      %p398 = pneg %p230
      %p399 = pneg %p227
      %p400 = pneg %p251
      %p401 = pneg %p248
      %p402 = pneg %p277
      %p403 = pneg %p274
      %p404 = scmp.lt.s32.totalorder %s26, 1
      %s405 = scalar_select %p404, %s26, 1
      %s406 = scalar_lea.vmem %s9, %s405
      %s407 = sadd.s32 %s26, %s27
      %p408 = scmp.lt.s32.totalorder %s407, 1
      %s409 = scalar_select %p408, %s407, 1
      %s410 = smul.u32 2, %s409
      %p411 = scmp.lt.s32.totalorder %s410, 3
      %s412 = scalar_select %p411, %s410, 3
      %s413 = scalar_lea.vmem %s0, %s412
      %s414 = sadd.s32 %s26, %s27
      %p415 = scmp.lt.s32.totalorder %s414, 1
      %s416 = scalar_select %p415, %s414, 1
      %s417 = smul.u32 2, %s416
      %s418 = sadd.s32 %s26, %s27
      %p419 = scmp.lt.s32.totalorder %s418, 1
      %s420 = scalar_select %p419, %s418, 1
      %s421 = smul.u32 2, %s420
      %p422 = scmp.lt.s32.totalorder %s421, 3
      %s423 = scalar_select %p422, %s421, 3
      %s424 = scalar_lea.vmem %s1, %s423
      %s425 = sadd.s32 %s26, %s27
      %p426 = scmp.lt.s32.totalorder %s425, 1
      %s427 = scalar_select %p426, %s425, 1
      %s428 = smul.u32 2, %s427
      %s429 = sadd.s32 %s26, %s27
      %p430 = scmp.lt.s32.totalorder %s429, 1
      %s431 = scalar_select %p430, %s429, 1
      %s432 = smul.u32 2, %s431
      %p433 = scmp.lt.s32.totalorder %s432, 3
      %s434 = scalar_select %p433, %s432, 3
      %s435 = scalar_lea.vmem %s2, %s434
      %s436 = sadd.s32 %s26, %s27
      %p437 = scmp.lt.s32.totalorder %s436, 1
      %s438 = scalar_select %p437, %s436, 1
      %s439 = smul.u32 2, %s438
      %p440 = scmp.lt.s32.totalorder %s26, 1
      %s441 = scalar_select %p440, %s26, 1
      %s442 = scalar_lea.vmem %s9, %s441
      %p444 = scmp.eq.s32.totalorder %s27, 0
      // Predicated region
      $region57: #{bce_ranking_loss.1} parent=55 // pred_check
        %p445 = pneg %p444
      $region58: #{bce_ranking_loss.1} parent=55 // pred_check_branch
        %447 = sbr.rel (%p445) target = $region60
      $region59: #{bce_ranking_loss.1} parent=55 // pred_region
        %448 = vst [vmem:[#allocation2] sm:$0x1] 0.0
      $region60: #{bce_ranking_loss.1} parent=55 // pred_fallthru
        _
      %s449 = sadd.s32 %s26, %s27
      %s450 = smul.u32 %s449, 256
      %v451 = vld [vmem:[%s3] sm:$0xff]
      %v452 = vld [vmem:[%s3 + $0x8] sm:$0xff]
      %v453 = vld [vmem:[%s3 + $0x10] sm:$0xff]
      %v454 = vld [vmem:[%s3 + $0x18] sm:$0xff]
      %v455 = vld [vmem:[%s4] sm:$0xff]
      %v456 = vld [vmem:[%s4 + $0x8] sm:$0xff]
      %v457 = vld [vmem:[%s4 + $0x10] sm:$0xff]
      %v458 = vld [vmem:[%s4 + $0x18] sm:$0xff]
      %v459 = vld [vmem:[%s5] sm:$0xff]
      %v460 = vld [vmem:[%s5 + $0x8] sm:$0xff]
      %v461 = vld [vmem:[%s5 + $0x10] sm:$0xff]
      %v462 = vld [vmem:[%s5 + $0x18] sm:$0xff]
      %v463 = vpack.c.bf16 %v460, %v459
      %v464 = vpack.c.bf16 %v462, %v461
      %v465 = vld [vmem:[%s6] sm:$0xff]
      %v466 = vld [vmem:[%s6 + $0x8] sm:$0xff]
      %v467 = vld [vmem:[%s6 + $0x10] sm:$0xff]
      %v468 = vld [vmem:[%s6 + $0x18] sm:$0xff]
      %v469 = vld [vmem:[%s7] sm:$0xff]
      %v470 = vld [vmem:[%s7 + $0x8] sm:$0xff]
      %v471 = vld [vmem:[%s7 + $0x10] sm:$0xff]
      %v472 = vld [vmem:[%s7 + $0x18] sm:$0xff]
      %v473 = vld [vmem:[#allocation3] sm:$0x1]
      %v474 = vlaneseq
      %v475 = vand.u32 %v474, 127
      %v476 = vld [vmem:[%s413] sm:$0x1]
      %v477 = vld [vmem:[%s424] sm:$0x1]
      %v478 = vld [vmem:[%s435] sm:$0x1]
      %480 = vset.pattern.permute.xlu0 0
      %481 = vperm.xlu0 %480, %v451
      %v482 = vpop.permute.xlu0 %481
      %485 = vset.pattern.permute.xlu0 0
      %486 = vperm.xlu0 %485, %v452
      %v487 = vpop.permute.xlu0 %486
      %490 = vset.pattern.permute.xlu0 0
      %491 = vperm.xlu0 %490, %v453
      %v492 = vpop.permute.xlu0 %491
      %495 = vset.pattern.permute.xlu0 0
      %496 = vperm.xlu0 %495, %v454
      %v497 = vpop.permute.xlu0 %496
      %v500 = vperm.slane %v476, 0
      %v502 = vmul.f32 %v482, %v500
      %v503 = vmul.f32 %v487, %v500
      %v504 = vmul.f32 %v492, %v500
      %v505 = vmul.f32 %v497, %v500
      %506 = vset.pattern.permute.xlu0 1
      %507 = vperm.xlu0 %506, %v451
      %v508 = vpop.permute.xlu0 %507
      %510 = vset.pattern.permute.xlu0 1
      %511 = vperm.xlu0 %510, %v452
      %v512 = vpop.permute.xlu0 %511
      %514 = vset.pattern.permute.xlu0 1
      %515 = vperm.xlu0 %514, %v453
      %v516 = vpop.permute.xlu0 %515
      %518 = vset.pattern.permute.xlu0 1
      %519 = vperm.xlu0 %518, %v454
      %v520 = vpop.permute.xlu0 %519
      %v523 = vperm.slane %v477, 0
      %v525 = vmul.f32 %v508, %v523
      %v526 = vmul.f32 %v512, %v523
      %v527 = vmul.f32 %v516, %v523
      %v528 = vmul.f32 %v520, %v523
      %v529 = vadd.f32 %v502, %v525
      %v530 = vadd.f32 %v503, %v526
      %v531 = vadd.f32 %v504, %v527
      %v532 = vadd.f32 %v505, %v528
      %v533 = vsub.f32 %v476, %v477
      %534 = vset.pattern.permute.xlu0 2
      %535 = vperm.xlu0 %534, %v451
      %v536 = vpop.permute.xlu0 %535
      %538 = vset.pattern.permute.xlu0 2
      %539 = vperm.xlu0 %538, %v452
      %v540 = vpop.permute.xlu0 %539
      %542 = vset.pattern.permute.xlu0 2
      %543 = vperm.xlu0 %542, %v453
      %v544 = vpop.permute.xlu0 %543
      %546 = vset.pattern.permute.xlu0 2
      %547 = vperm.xlu0 %546, %v454
      %v548 = vpop.permute.xlu0 %547
      %v551 = vperm.slane %v533, 0
      %v553 = vmul.f32 %v536, %v551
      %v554 = vmul.f32 %v540, %v551
      %v555 = vmul.f32 %v544, %v551
      %v556 = vmul.f32 %v548, %v551
      %v557 = vadd.f32 %v529, %v553
      %v558 = vadd.f32 %v530, %v554
      %v559 = vadd.f32 %v531, %v555
      %v560 = vadd.f32 %v532, %v556
      %v561 = vadd.f32 %v477, 0.1
      %v562 = vrcp.pop %v561
      %v563 = vmul.f32 %v561, %v562
      %v564 = vsub.f32 1.0, %v563
      %v565 = vmul.f32 %v562, %v564
      %v566 = vadd.f32 %v562, %v565
      %vm567 = vweird.f32 %v561
      %vm568 = vweird.f32 %v562
      %vm569 = vmor %vm567, %vm568
      %v570 = vsel %vm569, %v562, %v566
      %v571 = vand.u32 2147483647, %v561
      %vm572 = vcmp.eq.f32.partialorder %v571, 8.507059e+37
      %v573 = vand.u32 %v561, 2147483648
      %v574 = vor.u32 1.1754944e-38, %v573
      %v575 = vsel %vm572, %v574, %v570
      %v576 = vmul.f32 %v476, %v575
      %577 = vset.pattern.permute.xlu0 3
      %578 = vperm.xlu0 %577, %v451
      %v579 = vpop.permute.xlu0 %578
      %581 = vset.pattern.permute.xlu0 3
      %582 = vperm.xlu0 %581, %v452
      %v583 = vpop.permute.xlu0 %582
      %585 = vset.pattern.permute.xlu0 3
      %586 = vperm.xlu0 %585, %v453
      %v587 = vpop.permute.xlu0 %586
      %589 = vset.pattern.permute.xlu0 3
      %590 = vperm.xlu0 %589, %v454
      %v591 = vpop.permute.xlu0 %590
      %v594 = vperm.slane %v576, 0
      %v596 = vmul.f32 %v579, %v594
      %v597 = vmul.f32 %v583, %v594
      %v598 = vmul.f32 %v587, %v594
      %v599 = vmul.f32 %v591, %v594
      %v600 = vadd.f32 %v557, %v596
      %v601 = vadd.f32 %v558, %v597
      %v602 = vadd.f32 %v559, %v598
      %v603 = vadd.f32 %v560, %v599
      %v604 = vadd.f32 %v476, 0.1
      %v605 = vrcp.pop %v604
      %v606 = vmul.f32 %v604, %v605
      %v607 = vsub.f32 1.0, %v606
      %v608 = vmul.f32 %v605, %v607
      %v609 = vadd.f32 %v605, %v608
      %vm610 = vweird.f32 %v604
      %vm611 = vweird.f32 %v605
      %vm612 = vmor %vm610, %vm611
      %v613 = vsel %vm612, %v605, %v609
      %v614 = vand.u32 2147483647, %v604
      %vm615 = vcmp.eq.f32.partialorder %v614, 8.507059e+37
      %v616 = vand.u32 %v604, 2147483648
      %v617 = vor.u32 1.1754944e-38, %v616
      %v618 = vsel %vm615, %v617, %v613
      %v619 = vmul.f32 %v477, %v618
      %620 = vset.pattern.permute.xlu0 4
      %621 = vperm.xlu0 %620, %v451
      %v622 = vpop.permute.xlu0 %621
      %624 = vset.pattern.permute.xlu0 4
      %625 = vperm.xlu0 %624, %v452
      %v626 = vpop.permute.xlu0 %625
      %628 = vset.pattern.permute.xlu0 4
      %629 = vperm.xlu0 %628, %v453
      %v630 = vpop.permute.xlu0 %629
      %632 = vset.pattern.permute.xlu0 4
      %633 = vperm.xlu0 %632, %v454
      %v634 = vpop.permute.xlu0 %633
      %v637 = vperm.slane %v619, 0
      %v639 = vmul.f32 %v622, %v637
      %v640 = vmul.f32 %v626, %v637
      %v641 = vmul.f32 %v630, %v637
      %v642 = vmul.f32 %v634, %v637
      %v643 = vadd.f32 %v600, %v639
      %v644 = vadd.f32 %v601, %v640
      %v645 = vadd.f32 %v602, %v641
      %v646 = vadd.f32 %v603, %v642
      %648 = vset.pattern.permute.xlu0 0
      %649 = vperm.xlu0 %648, %v455
      %v650 = vpop.permute.xlu0 %649
      %653 = vset.pattern.permute.xlu0 0
      %654 = vperm.xlu0 %653, %v456
      %v655 = vpop.permute.xlu0 %654
      %658 = vset.pattern.permute.xlu0 0
      %659 = vperm.xlu0 %658, %v457
      %v660 = vpop.permute.xlu0 %659
      %663 = vset.pattern.permute.xlu0 0
      %664 = vperm.xlu0 %663, %v458
      %v665 = vpop.permute.xlu0 %664
      %v667 = vadd.f32 %v643, %v650
      %v668 = vadd.f32 %v644, %v655
      %v669 = vadd.f32 %v645, %v660
      %v670 = vadd.f32 %v646, %v665
      %vm671 = vcmp.gt.f32.partialorder %v667, 0.0
      %vm672 = vcmp.gt.f32.partialorder %v668, 0.0
      %vm673 = vcmp.gt.f32.partialorder %v669, 0.0
      %vm674 = vcmp.gt.f32.partialorder %v670, 0.0
      %v675 = vmul.f32 %v667, 0.2
      %v676 = vmul.f32 %v668, 0.2
      %v677 = vmul.f32 %v669, 0.2
      %v678 = vmul.f32 %v670, 0.2
      %v679 = vsel %vm671, %v667, %v675
      %v680 = vsel %vm672, %v668, %v676
      %v681 = vsel %vm673, %v669, %v677
      %v682 = vsel %vm674, %v670, %v678
      %v683 = vpack.c.bf16 %v680, %v679
      %v684 = vpack.c.bf16 %v682, %v681
      %686 = vset.pattern.permute.xlu0 0
      %687 = vperm.xlu0 %686, %v465
      %v688 = vpop.permute.xlu0 %687
      %691 = vset.pattern.permute.xlu0 0
      %692 = vperm.xlu0 %691, %v466
      %v693 = vpop.permute.xlu0 %692
      %696 = vset.pattern.permute.xlu0 0
      %697 = vperm.xlu0 %696, %v467
      %v698 = vpop.permute.xlu0 %697
      %701 = vset.pattern.permute.xlu0 0
      %702 = vperm.xlu0 %701, %v468
      %v703 = vpop.permute.xlu0 %702
      %vm705 = vcmask 261120
      %v707 = vsel %vm705, %v463, 0
      %v710 = vsel %vm705, %v464, 0
      %712 = vmatpush.bf16.msra.mxu0 0
      %713 = vmatpush.bf16.msra.mxu0 0
      %714 = vmatpush.bf16.msra.mxu0 0
      %715 = vmatpush.bf16.msra.mxu0 0
      %716 = vmatpush.bf16.msra.mxu0 0
      %717 = vmatpush.bf16.msra.mxu0 0
      %718 = vmatpush.bf16.msra.mxu0 %v684
      %719 = vmatpush.bf16.msra.mxu0 %v683
      %720 = vmatmul.bf16.gmra.mxu0 %v707
      %v721 = vpop.f32.mrf.mxu0
      %v722 = vadd.f32 %v688, %v721
      %v723 = vpop.f32.mrf.mxu0
      %v724 = vadd.f32 %v693, %v723
      %725 = vmatmul.bf16.gmra.mxu0 %v710
      %v726 = vpop.f32.mrf.mxu0
      %v727 = vadd.f32 %v698, %v726
      %v728 = vpop.f32.mrf.mxu0
      %v729 = vadd.f32 %v703, %v728
      %730 = vdwg.mxu0
      %vm731 = vcmp.gt.f32.partialorder %v722, 0.0
      %vm732 = vcmp.gt.f32.partialorder %v724, 0.0
      %vm733 = vcmp.gt.f32.partialorder %v727, 0.0
      %vm734 = vcmp.gt.f32.partialorder %v729, 0.0
      %v735 = vmul.f32 %v722, 0.2
      %v736 = vmul.f32 %v724, 0.2
      %v737 = vmul.f32 %v727, 0.2
      %v738 = vmul.f32 %v729, 0.2
      %v739 = vsel %vm731, %v722, %v735
      %v740 = vsel %vm732, %v724, %v736
      %v741 = vsel %vm733, %v727, %v737
      %v742 = vsel %vm734, %v729, %v738
      %744 = vset.pattern.permute.xlu0 0
      %745 = vperm.xlu0 %744, %v469
      %v746 = vpop.permute.xlu0 %745
      %749 = vset.pattern.permute.xlu0 0
      %750 = vperm.xlu0 %749, %v470
      %v751 = vpop.permute.xlu0 %750
      %754 = vset.pattern.permute.xlu0 0
      %755 = vperm.xlu0 %754, %v471
      %v756 = vpop.permute.xlu0 %755
      %759 = vset.pattern.permute.xlu0 0
      %760 = vperm.xlu0 %759, %v472
      %v761 = vpop.permute.xlu0 %760
      %v763 = vmul.f32 %v746, %v739
      %v764 = vmul.f32 %v751, %v740
      %v765 = vmul.f32 %v756, %v741
      %v766 = vmul.f32 %v761, %v742
      %v767 = vadd.f32 %v763, %v764
      %v768 = vadd.f32 %v767, %v765
      %v769 = vadd.f32 %v768, %v766
      %v770 = vrot.slane %v769, 4
      %v771 = vadd.f32 %v769, %v770
      %v772 = vrot.slane %v771, 2
      %v773 = vadd.f32 %v771, %v772
      %v774 = vrot.slane %v773, 1
      %v775 = vadd.f32 %v773, %v774
      %777 = vset.pattern.permute.xlu0 0
      %778 = vperm.xlu0 %777, %v473
      %v779 = vpop.permute.xlu0 %778
      %v781 = vperm.slane %v779, 0
      %v782 = vadd.f32 %v775, %v781
      %v783 = vadd.f32 %v478, 1.0
      %v784 = vmul.f32 %v783, 0.5
      %v785 = vmax.f32 %v782, 0.0
      %v786 = vand.u32 2147483647, %v782
      %v787 = vsub.f32 0.0, %v786
      %v788 = vmul.f32 %v787, 1.442695
      %v789 = vpow.pop %v788
      %v790 = vadd.f32 %v789, 1.0
      %v791 = vlog2.pop %v790
      %v792 = vmul.f32 %v791, 0.6931472
      %v793 = vadd.f32 %v785, %v792
      %v794 = vsub.f32 %v793, %v782
      %v795 = vmin.f32 %v794, 100.0
      %v796 = vmul.f32 %v784, %v795
      %v797 = vsub.f32 1.0, %v784
      %v798 = vmin.f32 %v793, 100.0
      %v799 = vmul.f32 %v797, %v798
      %v800 = vadd.f32 %v796, %v799
      %s801 = sadd.s32 %s450, 0
      %v802 = vstv %s801
      %v803 = vadd.s32 %v802, %v475
      %vm804 = vcmp.lt.s32.totalorder %v803, 480
      %v805 = vld [vmem:[#allocation2] sm:$0x1]
      %v806 = vsel %vm804, %v800, 0.0
      %v807 = vadd.f32 %v805, %v806
      %808 = vst [vmem:[#allocation2] sm:$0x1] %v807
      %s809 = scalar_lea.vmem %s413, 1
      %v810 = vld [vmem:[%s809] sm:$0x1]
      %s811 = scalar_lea.vmem %s424, 1
      %v812 = vld [vmem:[%s811] sm:$0x1]
      %s813 = scalar_lea.vmem %s435, 1
      %v814 = vld [vmem:[%s813] sm:$0x1]
      %v816 = vperm.slane %v810, 0
      %v818 = vmul.f32 %v482, %v816
      %v819 = vmul.f32 %v487, %v816
      %v820 = vmul.f32 %v492, %v816
      %v821 = vmul.f32 %v497, %v816
      %v823 = vperm.slane %v812, 0
      %v825 = vmul.f32 %v508, %v823
      %v826 = vmul.f32 %v512, %v823
      %v827 = vmul.f32 %v516, %v823
      %v828 = vmul.f32 %v520, %v823
      %v829 = vadd.f32 %v818, %v825
      %v830 = vadd.f32 %v819, %v826
      %v831 = vadd.f32 %v820, %v827
      %v832 = vadd.f32 %v821, %v828
      %v833 = vsub.f32 %v810, %v812
      %v835 = vperm.slane %v833, 0
      %v837 = vmul.f32 %v536, %v835
      %v838 = vmul.f32 %v540, %v835
      %v839 = vmul.f32 %v544, %v835
      %v840 = vmul.f32 %v548, %v835
      %v841 = vadd.f32 %v829, %v837
      %v842 = vadd.f32 %v830, %v838
      %v843 = vadd.f32 %v831, %v839
      %v844 = vadd.f32 %v832, %v840
      %v845 = vadd.f32 %v812, 0.1
      %v846 = vrcp.pop %v845
      %v847 = vmul.f32 %v845, %v846
      %v848 = vsub.f32 1.0, %v847
      %v849 = vmul.f32 %v846, %v848
      %v850 = vadd.f32 %v846, %v849
      %vm851 = vweird.f32 %v845
      %vm852 = vweird.f32 %v846
      %vm853 = vmor %vm851, %vm852
      %v854 = vsel %vm853, %v846, %v850
      %v855 = vand.u32 2147483647, %v845
      %vm856 = vcmp.eq.f32.partialorder %v855, 8.507059e+37
      %v857 = vand.u32 %v845, 2147483648
      %v858 = vor.u32 1.1754944e-38, %v857
      %v859 = vsel %vm856, %v858, %v854
      %v860 = vmul.f32 %v810, %v859
      %v862 = vperm.slane %v860, 0
      %v864 = vmul.f32 %v579, %v862
      %v865 = vmul.f32 %v583, %v862
      %v866 = vmul.f32 %v587, %v862
      %v867 = vmul.f32 %v591, %v862
      %v868 = vadd.f32 %v841, %v864
      %v869 = vadd.f32 %v842, %v865
      %v870 = vadd.f32 %v843, %v866
      %v871 = vadd.f32 %v844, %v867
      %v872 = vadd.f32 %v810, 0.1
      %v873 = vrcp.pop %v872
      %v874 = vmul.f32 %v872, %v873
      %v875 = vsub.f32 1.0, %v874
      %v876 = vmul.f32 %v873, %v875
      %v877 = vadd.f32 %v873, %v876
      %vm878 = vweird.f32 %v872
      %vm879 = vweird.f32 %v873
      %vm880 = vmor %vm878, %vm879
      %v881 = vsel %vm880, %v873, %v877
      %v882 = vand.u32 2147483647, %v872
      %vm883 = vcmp.eq.f32.partialorder %v882, 8.507059e+37
      %v884 = vand.u32 %v872, 2147483648
      %v885 = vor.u32 1.1754944e-38, %v884
      %v886 = vsel %vm883, %v885, %v881
      %v887 = vmul.f32 %v812, %v886
      %v889 = vperm.slane %v887, 0
      %v891 = vmul.f32 %v622, %v889
      %v892 = vmul.f32 %v626, %v889
      %v893 = vmul.f32 %v630, %v889
      %v894 = vmul.f32 %v634, %v889
      %v895 = vadd.f32 %v868, %v891
      %v896 = vadd.f32 %v869, %v892
      %v897 = vadd.f32 %v870, %v893
      %v898 = vadd.f32 %v871, %v894
      %v899 = vadd.f32 %v895, %v650
      %v900 = vadd.f32 %v896, %v655
      %v901 = vadd.f32 %v897, %v660
      %v902 = vadd.f32 %v898, %v665
      %vm903 = vcmp.gt.f32.partialorder %v899, 0.0
      %vm904 = vcmp.gt.f32.partialorder %v900, 0.0
      %vm905 = vcmp.gt.f32.partialorder %v901, 0.0
      %vm906 = vcmp.gt.f32.partialorder %v902, 0.0
      %v907 = vmul.f32 %v899, 0.2
      %v908 = vmul.f32 %v900, 0.2
      %v909 = vmul.f32 %v901, 0.2
      %v910 = vmul.f32 %v902, 0.2
      %v911 = vsel %vm903, %v899, %v907
      %v912 = vsel %vm904, %v900, %v908
      %v913 = vsel %vm905, %v901, %v909
      %v914 = vsel %vm906, %v902, %v910
      %v915 = vpack.c.bf16 %v912, %v911
      %v916 = vpack.c.bf16 %v914, %v913
      %917 = vmatpush.bf16.msra.mxu0 0
      %918 = vmatpush.bf16.msra.mxu0 0
      %919 = vmatpush.bf16.msra.mxu0 0
      %920 = vmatpush.bf16.msra.mxu0 0
      %921 = vmatpush.bf16.msra.mxu0 0
      %922 = vmatpush.bf16.msra.mxu0 0
      %923 = vmatpush.bf16.msra.mxu0 %v916
      %924 = vmatpush.bf16.msra.mxu0 %v915
      %925 = vmatmul.bf16.gmra.mxu0 %v707
      %v926 = vpop.f32.mrf.mxu0
      %v927 = vadd.f32 %v688, %v926
      %v928 = vpop.f32.mrf.mxu0
      %v929 = vadd.f32 %v693, %v928
      %930 = vmatmul.bf16.gmra.mxu0 %v710
      %v931 = vpop.f32.mrf.mxu0
      %v932 = vadd.f32 %v698, %v931
      %v933 = vpop.f32.mrf.mxu0
      %v934 = vadd.f32 %v703, %v933
      %935 = vdwg.mxu0
      %vm936 = vcmp.gt.f32.partialorder %v927, 0.0
      %vm937 = vcmp.gt.f32.partialorder %v929, 0.0
      %vm938 = vcmp.gt.f32.partialorder %v932, 0.0
      %vm939 = vcmp.gt.f32.partialorder %v934, 0.0
      %v940 = vmul.f32 %v927, 0.2
      %v941 = vmul.f32 %v929, 0.2
      %v942 = vmul.f32 %v932, 0.2
      %v943 = vmul.f32 %v934, 0.2
      %v944 = vsel %vm936, %v927, %v940
      %v945 = vsel %vm937, %v929, %v941
      %v946 = vsel %vm938, %v932, %v942
      %v947 = vsel %vm939, %v934, %v943
      %v948 = vmul.f32 %v746, %v944
      %v949 = vmul.f32 %v751, %v945
      %v950 = vmul.f32 %v756, %v946
      %v951 = vmul.f32 %v761, %v947
      %v952 = vadd.f32 %v948, %v949
      %v953 = vadd.f32 %v952, %v950
      %v954 = vadd.f32 %v953, %v951
      %v955 = vrot.slane %v954, 4
      %v956 = vadd.f32 %v954, %v955
      %v957 = vrot.slane %v956, 2
      %v958 = vadd.f32 %v956, %v957
      %v959 = vrot.slane %v958, 1
      %v960 = vadd.f32 %v958, %v959
      %v961 = vadd.f32 %v960, %v781
      %v962 = vadd.f32 %v814, 1.0
      %v963 = vmul.f32 %v962, 0.5
      %v964 = vmax.f32 %v961, 0.0
      %v965 = vand.u32 2147483647, %v961
      %v966 = vsub.f32 0.0, %v965
      %v967 = vmul.f32 %v966, 1.442695
      %v968 = vpow.pop %v967
      %v969 = vadd.f32 %v968, 1.0
      %v970 = vlog2.pop %v969
      %v971 = vmul.f32 %v970, 0.6931472
      %v972 = vadd.f32 %v964, %v971
      %v973 = vsub.f32 %v972, %v961
      %v974 = vmin.f32 %v973, 100.0
      %v975 = vmul.f32 %v963, %v974
      %v976 = vsub.f32 1.0, %v963
      %v977 = vmin.f32 %v972, 100.0
      %v978 = vmul.f32 %v976, %v977
      %v979 = vadd.f32 %v975, %v978
      %s980 = sadd.s32 %s450, 128
      %v981 = vstv %s980
      %v982 = vadd.s32 %v981, %v475
      %vm983 = vcmp.lt.s32.totalorder %v982, 480
      %v984 = vld [vmem:[#allocation2] sm:$0x1]
      %v985 = vsel %vm983, %v979, 0.0
      %v986 = vadd.f32 %v984, %v985
      %987 = vst [vmem:[#allocation2] sm:$0x1] %v986
      // Predicated region
      $region61: #{bce_ranking_loss.1} parent=55 // pred_check
        %p988 = pneg %p444
      $region62: #{bce_ranking_loss.1} parent=55 // pred_check_branch
        %990 = sbr.rel (%p988) target = $region64
      $region63: #{bce_ranking_loss.1} parent=55 // pred_region
        %v991 = vld [vmem:[#allocation2] sm:$0x1]
        %992 = vst [vmem:[%s442] sm:$0x1] %v991
      $region64: #{bce_ranking_loss.1} parent=55 // pred_fallthru
        _
      %p993 = scmp.lt.s32.totalorder %s26, 1
      %s994 = scalar_select %p993, %s26, 1
      %s995 = scalar_lea.vmem %s9, %s994
      // Predicated region
      $region65: #{bce_ranking_loss.1} parent=55 // pred_check
        %p996 = pneg %p274
      $region66: #{bce_ranking_loss.1} parent=55 // pred_check_branch
        %998 = sbr.rel (%p996) target = $region68
      $region67: #{bce_ranking_loss.1} parent=55 // pred_region
        _
      $region68: #{bce_ranking_loss.1} parent=55 // pred_fallthru
        _
    $region56: #{bce_ranking_loss.1} parent=5 // pred_fallthru
      _
    %p999 = scmp.le.s32.totalorder 2, %s17
    // Predicated region
    $region69: #{bce_ranking_loss.1} parent=5 // pred_check
      %p1000 = pneg %p999
    $region70: #{bce_ranking_loss.1} parent=5 // pred_check_branch
      %1002 = sbr.rel (%p1000) target = $region72
    $region71: #{bce_ranking_loss.1} parent=5 // pred_region
      %s1003 = ssub.s32 %s17, 2
      // Predicated region
      $region73: #{bce_ranking_loss.1} parent=71 // pred_check
        %p1004 = pneg %p280
      $region74: #{bce_ranking_loss.1} parent=71 // pred_check_branch
        %1006 = sbr.rel (%p1004) target = $region76
      $region75: #{bce_ranking_loss.1} parent=71 // pred_region
        %p1007 = scmp.lt.s32.totalorder %s28, 1
        %s1008 = scalar_select %p1007, %s28, 1
        %s1009 = scalar_lea.vmem %s9, %s1008
      $region76: #{bce_ranking_loss.1} parent=71 // pred_fallthru
        _
    $region72: #{bce_ranking_loss.1} parent=5 // pred_fallthru
      _
  $region6: #{bce_ranking_loss.1} parent=0 // loop_footer
    %s21 = sadd.s32 1, %s17
  $region7: #{bce_ranking_loss.1} parent=0 // loop_footer_branch
    %16 = sbr.rel target = $region3
  $region8: #{bce_ranking_loss.1} parent=0 // loop_exit
    _

</llo_original>
